<compile_context>
chip_gen: v7x
topology: tpu7x:2x2x1
jax: 0.10.0
libtpu: 0.0.40
codegen_flags: <defaults>
</compile_context>

<pallas_src>
import functools

import jax
import jax.numpy as jnp
from jax.experimental import pallas as pl
from jax.experimental.pallas import tpu as pltpu

DIMS = [128, 256, 64, 3]


def _regressor_kernel(x_ref, w1_ref, b1_ref, w2_ref, b2_ref, w3_ref, b3_ref,
                      o_ref):
    # x_ref: (128, tn) tile (channels x positions) in the compute dtype.
    x = x_ref[...]

    # Layer 1: (256,128) @ (128,tn) -> (256,tn), f32 accumulation on the MXU.
    h1 = jnp.dot(w1_ref[...], x, preferred_element_type=jnp.float32)
    h1 = jnp.maximum(h1 + b1_ref[...], 0.0)                       # bias + ReLU (f32)

    # Layer 2: (64,256) @ (256,tn) -> (64,tn)
    h2 = jnp.dot(w2_ref[...], h1.astype(w2_ref.dtype),
                 preferred_element_type=jnp.float32)
    h2 = jnp.maximum(h2 + b2_ref[...], 0.0)

    # Layer 3: (3,64) @ (64,tn) -> (3,tn)
    h3 = jnp.dot(w3_ref[...], h2.astype(w3_ref.dtype),
                 preferred_element_type=jnp.float32)
    o_ref[...] = (h3 + b3_ref[...]).astype(o_ref.dtype)


@functools.partial(jax.jit, static_argnames=("tn", "use_bf16"))
def regressor_forward(x, params, tn=1024, use_bf16=True):
    """x: (B, 128, N) float32 -> (B, N, 3) float32 (same as the torch module)."""
    w1, b1, w2, b2, w3, b3 = params
    B, C, N = x.shape
    assert C == DIMS[0]

    cdt = jnp.bfloat16 if use_bf16 else jnp.float32
    xc = x.astype(cdt)
    w1c, w2c, w3c = (w.astype(cdt) for w in (w1, w2, w3))   # biases stay f32

    # Column (position) tile: full N if it fits in one tile, else `tn`
    # (which must be a multiple of 128 to satisfy the lane constraint).
    if N <= tn:
        tn_eff = N
    else:
        assert tn % 128 == 0, "tn must be a multiple of 128"
        tn_eff = tn
    grid = (B, pl.cdiv(N, tn_eff))   # partial last column block masked by Pallas

    out = pl.pallas_call(
        _regressor_kernel,
        out_shape=jax.ShapeDtypeStruct((B, DIMS[3], N), jnp.float32),
        grid_spec=pltpu.PrefetchScalarGridSpec(
            num_scalar_prefetch=0,
            grid=grid,
            in_specs=[
                # x tile: batch dim squeezed, (128, tn) in-kernel.
                pl.BlockSpec((None, DIMS[0], tn_eff), lambda b, j: (b, 0, j)),
                pl.BlockSpec((DIMS[1], DIMS[0]), lambda b, j: (0, 0)),  # W1
                pl.BlockSpec((DIMS[1], 1), lambda b, j: (0, 0)),        # b1
                pl.BlockSpec((DIMS[2], DIMS[1]), lambda b, j: (0, 0)),  # W2
                pl.BlockSpec((DIMS[2], 1), lambda b, j: (0, 0)),        # b2
                pl.BlockSpec((DIMS[3], DIMS[2]), lambda b, j: (0, 0)),  # W3
                pl.BlockSpec((DIMS[3], 1), lambda b, j: (0, 0)),        # b3
            ],
            out_specs=pl.BlockSpec((None, DIMS[3], tn_eff),
                                   lambda b, j: (b, 0, j)),
        ),
        compiler_params=pltpu.CompilerParams(
            dimension_semantics=("parallel", "parallel")),
    )(xc, w1c, b1, w2c, b2, w3c, b3)

    # (B, 3, N) -> (B, N, 3): matches the module's permute(0, 2, 1).  Only 3
    # floats per position, so this is ~2% of the input traffic.
    return jnp.transpose(out, (0, 2, 1))


def init_params(key):
    """Torch Conv1d default init (U[-1/sqrt(fan_in), +1/sqrt(fan_in)]).

    Weights kept in native (C_out, C_in) layout (kernel dim squeezed);
    biases as (C_out, 1) for broadcasting over positions.
    """
    params = []
    keys = jax.random.split(key, 2 * (len(DIMS) - 1))
    for i in range(len(DIMS) - 1):
        cin, cout = DIMS[i], DIMS[i + 1]
        bound = 1.0 / (cin ** 0.5)
        w = jax.random.uniform(keys[2 * i], (cout, cin), jnp.float32,
                               -bound, bound)
        b = jax.random.uniform(keys[2 * i + 1], (cout, 1), jnp.float32,
                               -bound, bound)
        params += [w, b]
    return tuple(params)


def _reference(x, params):
    """Pure-JAX reference of the torch forward (high-precision matmuls)."""
    w1, b1, w2, b2, w3, b3 = params
    hp = jax.lax.Precision.HIGHEST
    h = jnp.transpose(x, (0, 2, 1))                                # (B, N, C)
    h = jnp.maximum(jnp.matmul(h, w1.T, precision=hp) + b1[:, 0], 0.0)
    h = jnp.maximum(jnp.matmul(h, w2.T, precision=hp) + b2[:, 0], 0.0)
    h = jnp.matmul(h, w3.T, precision=hp) + b3[:, 0]
    return h                                                       # (B, N, 3)


if __name__ == "__main__":
    B, C, N = 2, 128, 16
    x = jax.random.normal(jax.random.PRNGKey(0), (B, C, N), jnp.float32)
    params = init_params(jax.random.PRNGKey(42))

    ref = _reference(x, params)

    # Full-precision path: tight check of the kernel structure / tiling.
    out_f32 = jax.block_until_ready(
        regressor_forward(x, params, use_bf16=False))
    assert out_f32.shape == (B, N, 3), out_f32.shape
    assert jnp.allclose(out_f32, ref, atol=1e-4, rtol=1e-4), "f32 mismatch"

    # Default bf16-operand path (f32 accumulation): bf16-appropriate tolerance.
    out = jax.block_until_ready(regressor_forward(x, params))
    assert out.shape == (B, N, 3), out.shape
    assert jnp.allclose(out, ref, atol=3e-2, rtol=3e-2), "bf16 mismatch"

    # Ragged / multi-tile path: N not a multiple of the column tile exercises
    # the cdiv grid with a masked partial last block.
    x2 = jax.random.normal(jax.random.PRNGKey(1), (B, C, 200), jnp.float32)
    out2 = jax.block_until_ready(
        regressor_forward(x2, params, tn=128, use_bf16=False))
    assert out2.shape == (B, 200, 3), out2.shape
    assert jnp.allclose(out2, _reference(x2, params), atol=1e-4, rtol=1e-4), \
        "ragged-N mismatch"

    print("KERNEL_OK")
</pallas_src>

<mosaic_0001>
module attributes {stable_mosaic.version = 11 : i64} {
  func.func @_regressor_kernel(%arg0: i32, %arg1: i32, %arg2: memref<1x128x16xf32, #tpu.memory_space<vmem>>, %arg3: memref<256x128xf32, #tpu.memory_space<vmem>>, %arg4: memref<256x1xf32, #tpu.memory_space<vmem>>, %arg5: memref<64x256xf32, #tpu.memory_space<vmem>>, %arg6: memref<64x1xf32, #tpu.memory_space<vmem>>, %arg7: memref<3x64xf32, #tpu.memory_space<vmem>>, %arg8: memref<3x1xf32, #tpu.memory_space<vmem>>, %arg9: memref<1x3x16xf32, #tpu.memory_space<vmem>>) attributes {dimension_semantics = [#tpu.dimension_semantics<parallel>, #tpu.dimension_semantics<parallel>], iteration_bounds = array<i64: 2, 1>, scalar_prefetch = 0 : i64, scratch_operands = 0 : i64, tpu.core_type = #tpu.core_type<tc>, window_params = [{transform_indices = @transform_0, window_bounds = array<i64: 1, 128, 16>}, {pipeline_mode = #tpu.pipeline_mode<synchronous>, transform_indices = @transform_1, window_bounds = array<i64: 256, 128>}, {pipeline_mode = #tpu.pipeline_mode<synchronous>, transform_indices = @transform_2, window_bounds = array<i64: 256, 1>}, {pipeline_mode = #tpu.pipeline_mode<synchronous>, transform_indices = @transform_3, window_bounds = array<i64: 64, 256>}, {pipeline_mode = #tpu.pipeline_mode<synchronous>, transform_indices = @transform_4, window_bounds = array<i64: 64, 1>}, {pipeline_mode = #tpu.pipeline_mode<synchronous>, transform_indices = @transform_5, window_bounds = array<i64: 3, 64>}, {pipeline_mode = #tpu.pipeline_mode<synchronous>, transform_indices = @transform_6, window_bounds = array<i64: 3, 1>}, {transform_indices = @transform_7, window_bounds = array<i64: 1, 3, 16>}]} {
    %c0 = arith.constant 0 : index
    %c0_0 = arith.constant 0 : index
    %c0_1 = arith.constant 0 : index
    %0 = vector.load %arg2[%c0, %c0_0, %c0_1] : memref<1x128x16xf32, #tpu.memory_space<vmem>>, vector<1x128x16xf32>
    %1 = vector.shape_cast %0 : vector<1x128x16xf32> to vector<128x16xf32>
    %c0_2 = arith.constant 0 : index
    %c0_3 = arith.constant 0 : index
    %2 = vector.load %arg3[%c0_2, %c0_3] : memref<256x128xf32, #tpu.memory_space<vmem>>, vector<256x128xf32>
    %cst = arith.constant dense<0.000000e+00> : vector<256x16xf32>
    %3 = tpu.matmul %2, %1, %cst {dimension_numbers = #tpu.dot_dimension_numbers<[1], [0], [0], [1], [0, 0, 1, 1], [], []>} : vector<256x128xf32>, vector<128x16xf32>, vector<256x16xf32> -> vector<256x16xf32>
    %c0_4 = arith.constant 0 : index
    %c0_5 = arith.constant 0 : index
    %4 = vector.load %arg4[%c0_4, %c0_5] : memref<256x1xf32, #tpu.memory_space<vmem>>, vector<256x1xf32>
    %5 = vector.broadcast %4 : vector<256x1xf32> to vector<256x16xf32>
    %6 = arith.addf %3, %5 : vector<256x16xf32>
    %cst_6 = arith.constant 0.000000e+00 : f32
    %7 = vector.broadcast %cst_6 : f32 to vector<256x16xf32>
    %8 = arith.maximumf %6, %7 : vector<256x16xf32>
    %c0_7 = arith.constant 0 : index
    %c0_8 = arith.constant 0 : index
    %9 = vector.load %arg5[%c0_7, %c0_8] : memref<64x256xf32, #tpu.memory_space<vmem>>, vector<64x256xf32>
    %cst_9 = arith.constant dense<0.000000e+00> : vector<64x16xf32>
    %10 = tpu.matmul %9, %8, %cst_9 {dimension_numbers = #tpu.dot_dimension_numbers<[1], [0], [0], [1], [0, 0, 1, 1], [], []>} : vector<64x256xf32>, vector<256x16xf32>, vector<64x16xf32> -> vector<64x16xf32>
    %c0_10 = arith.constant 0 : index
    %c0_11 = arith.constant 0 : index
    %11 = vector.load %arg6[%c0_10, %c0_11] : memref<64x1xf32, #tpu.memory_space<vmem>>, vector<64x1xf32>
    %12 = vector.broadcast %11 : vector<64x1xf32> to vector<64x16xf32>
    %13 = arith.addf %10, %12 : vector<64x16xf32>
    %cst_12 = arith.constant 0.000000e+00 : f32
    %14 = vector.broadcast %cst_12 : f32 to vector<64x16xf32>
    %15 = arith.maximumf %13, %14 : vector<64x16xf32>
    %c0_13 = arith.constant 0 : index
    %c0_14 = arith.constant 0 : index
    %16 = vector.load %arg7[%c0_13, %c0_14] : memref<3x64xf32, #tpu.memory_space<vmem>>, vector<3x64xf32>
    %cst_15 = arith.constant dense<0.000000e+00> : vector<3x16xf32>
    %17 = tpu.matmul %16, %15, %cst_15 {dimension_numbers = #tpu.dot_dimension_numbers<[1], [0], [0], [1], [0, 0, 1, 1], [], []>} : vector<3x64xf32>, vector<64x16xf32>, vector<3x16xf32> -> vector<3x16xf32>
    %c0_16 = arith.constant 0 : index
    %c0_17 = arith.constant 0 : index
    %18 = vector.load %arg8[%c0_16, %c0_17] : memref<3x1xf32, #tpu.memory_space<vmem>>, vector<3x1xf32>
    %19 = vector.broadcast %18 : vector<3x1xf32> to vector<3x16xf32>
    %20 = arith.addf %17, %19 : vector<3x16xf32>
    %c0_18 = arith.constant 0 : index
    %c0_19 = arith.constant 0 : index
    %c0_20 = arith.constant 0 : index
    %21 = vector.load %arg9[%c0_18, %c0_19, %c0_20] : memref<1x3x16xf32, #tpu.memory_space<vmem>>, vector<1x3x16xf32>
    %22 = vector.shape_cast %21 : vector<1x3x16xf32> to vector<3x16xf32>
    %23 = vector.shape_cast %20 : vector<3x16xf32> to vector<1x3x16xf32>
    tpu.vector_store %arg9[%c0_18, %c0_19, %c0_20], %23 {strides = array<i32>} : memref<1x3x16xf32, #tpu.memory_space<vmem>>, vector<1x3x16xf32>,
    return
  }
  func.func @transform_0(%arg0: i32, %arg1: i32) -> (i32, i32, i32) {
    %c0_i32 = arith.constant 0 : i32
    %c0_i32_0 = arith.constant 0 : i32
    return %arg0, %c0_i32, %arg1 : i32, i32, i32
  }
  func.func @transform_1(%arg0: i32, %arg1: i32) -> (i32, i32) {
    %c0_i32 = arith.constant 0 : i32
    %c0_i32_0 = arith.constant 0 : i32
    %c0_i32_1 = arith.constant 0 : i32
    return %c0_i32, %c0_i32_0 : i32, i32
  }
  func.func @transform_2(%arg0: i32, %arg1: i32) -> (i32, i32) {
    %c0_i32 = arith.constant 0 : i32
    %c0_i32_0 = arith.constant 0 : i32
    %c0_i32_1 = arith.constant 0 : i32
    return %c0_i32, %c0_i32_0 : i32, i32
  }
  func.func @transform_3(%arg0: i32, %arg1: i32) -> (i32, i32) {
    %c0_i32 = arith.constant 0 : i32
    %c0_i32_0 = arith.constant 0 : i32
    %c0_i32_1 = arith.constant 0 : i32
    return %c0_i32, %c0_i32_0 : i32, i32
  }
  func.func @transform_4(%arg0: i32, %arg1: i32) -> (i32, i32) {
    %c0_i32 = arith.constant 0 : i32
    %c0_i32_0 = arith.constant 0 : i32
    %c0_i32_1 = arith.constant 0 : i32
    return %c0_i32, %c0_i32_0 : i32, i32
  }
  func.func @transform_5(%arg0: i32, %arg1: i32) -> (i32, i32) {
    %c0_i32 = arith.constant 0 : i32
    %c0_i32_0 = arith.constant 0 : i32
    %c0_i32_1 = arith.constant 0 : i32
    return %c0_i32, %c0_i32_0 : i32, i32
  }
  func.func @transform_6(%arg0: i32, %arg1: i32) -> (i32, i32) {
    %c0_i32 = arith.constant 0 : i32
    %c0_i32_0 = arith.constant 0 : i32
    %c0_i32_1 = arith.constant 0 : i32
    return %c0_i32, %c0_i32_0 : i32, i32
  }
  func.func @transform_7(%arg0: i32, %arg1: i32) -> (i32, i32, i32) {
    %c0_i32 = arith.constant 0 : i32
    %c0_i32_0 = arith.constant 0 : i32
    return %arg0, %c0_i32, %arg1 : i32, i32, i32
  }
}

</mosaic_0001>

<llo_original>
// kernel: regressor_forward.1
$region0: #{regressor_forward.1}
  #allocation0 [shape = 'u32[]', space=smem, size = 0x4, offset = 0x4, fixed_abs, tag = 'smem constant byte address 0x4 - core index']
  #allocation1 [shape = 'u32[144,128]{1,0:T(1,128)}', space=vmem, size = 0x12000, scoped, tag = 'internal scratch']
  %s0 = inlined_call_operand.vmem [shape: f32[2,128,16], index: 0, kind: input, shape index: {}]
  %s1 = inlined_call_operand.vmem [shape: f32[256,128], index: 1, kind: input, shape index: {}]
  %s2 = inlined_call_operand.vmem [shape: f32[256,1], index: 2, kind: input, shape index: {}]
  %s3 = inlined_call_operand.vmem [shape: f32[64,256], index: 3, kind: input, shape index: {}]
  %s4 = inlined_call_operand.vmem [shape: f32[64,1], index: 4, kind: input, shape index: {}]
  %s5 = inlined_call_operand.vmem [shape: f32[3,64], index: 5, kind: input, shape index: {}]
  %s6 = inlined_call_operand.vmem [shape: f32[3,1], index: 6, kind: input, shape index: {}]
  %s7 = inlined_call_operand.vmem [shape: f32[2,3,16], index: 7, kind: output, shape index: {}]
  %s8 = sld [smem:[#allocation0]]
  $region61: #{regressor_forward.1} parent=0
    _
  %s10 = ssub.s32 1, %s8
  %s11 = scalar_select 0, %s10, %s8
  loop: start=0, step=1, limit=4
  $region2: #{regressor_forward.1} parent=0 // loop_pre_header
    _
  $region3: #{regressor_forward.1} parent=0 // loop_header
    %s13 = sphi 0, %s17
    %p14 = scmp.ge.s32.totalorder %s13, 4
    %s20 = sphi 0, %s32
    %s21 = sphi 0, %s28
    %s22 = sphi 0, %s20
    %s23 = sphi 0, %s21
    %s24 = sphi 0, %s22
    %s25 = sphi 0, %s23
    %s37 = sphi 0, %s39
    %s40 = sphi 0, %s37
    %s41 = sphi 0, %s40
    %s57 = sphi 0, %s41
    %s61 = sphi 0, %s61
    %s63 = sphi 0, %s61
    %s64 = sphi 0, %s63
    %s78 = sphi 0, %s64
    %s82 = sphi 0, %s82
    %s84 = sphi 0, %s82
    %s85 = sphi 0, %s84
    %s99 = sphi 0, %s85
    %s103 = sphi 0, %s103
    %s105 = sphi 0, %s103
    %s106 = sphi 0, %s105
    %s120 = sphi 0, %s106
    %s124 = sphi 0, %s124
    %s126 = sphi 0, %s124
    %s127 = sphi 0, %s126
    %s141 = sphi 0, %s127
    %s145 = sphi 0, %s145
    %s147 = sphi 0, %s145
    %s148 = sphi 0, %s147
    %s162 = sphi 0, %s148
    %s166 = sphi 0, %s166
    %s168 = sphi 0, %s166
    %s169 = sphi 0, %s168
    %s183 = sphi 0, %s169
    %s191 = sphi 0, %s193
    %s194 = sphi 0, %s191
    %s195 = sphi 0, %s194
    %s211 = sphi 0, %s195
  $region4: #{regressor_forward.1} parent=0 // loop_header_branch
    %16 = sbr.rel (%p14) target = $region8
  $region5: #{regressor_forward.1} parent=0 // loop_body
    %s18 = ssub.s32 %s13, 1
    %s19 = ssub.s32 %s13, 2
    %s26 = sadd.s32 1, %s21
    %p27 = scmp.ge.s32.totalorder %s26, 1
    %s28 = scalar_select %p27, 0, %s26
    %s29 = sadd.s32 1, %s20
    %s30 = scalar_select %p27, %s29, %s20
    %p31 = scmp.ge.s32.totalorder %s30, 2
    %s32 = scalar_select %p31, 0, %s30
    %s33 = ssub.s32 %s20, %s32
    %s34 = ssub.s32 %s21, %s28
    %s35 = sor.u32 %s33, %s34
    %p36 = scmp.eq.s32.totalorder %s35, 0
    %s38 = sadd.s32 %s37, 1
    %s39 = scalar_select %p36, %s37, %s38
    %p42 = pneg %p36
    %p43 = scmp.eq.s32.totalorder %s13, 1
    %p44 = por %p42, %p43
    %p45 = scmp.ne.s32.totalorder %s37, %s40
    %p46 = scmp.eq.s32.totalorder %s13, 0
    %p47 = por %p45, %p46
    %p48 = scmp.ne.s32.totalorder %s37, %s40
    %p49 = scmp.eq.s32.totalorder %s18, 1
    %p50 = por %p48, %p49
    %p51 = scmp.ne.s32.totalorder %s40, %s41
    %p52 = scmp.eq.s32.totalorder %s18, 0
    %p53 = por %p51, %p52
    %p54 = scmp.ne.s32.totalorder %s40, %s41
    %p55 = scmp.eq.s32.totalorder %s19, 1
    %p56 = por %p54, %p55
    %p58 = scmp.ne.s32.totalorder %s41, %s57
    %p59 = scmp.eq.s32.totalorder %s19, 0
    %p60 = por %p58, %p59
    %s62 = sadd.s32 %s61, 1
    %p65 = scmp.eq.s32.totalorder %s13, 1
    %p66 = scmp.ne.s32.totalorder %s61, %s63
    %p67 = scmp.eq.s32.totalorder %s13, 0
    %p68 = por %p66, %p67
    %p69 = scmp.ne.s32.totalorder %s61, %s63
    %p70 = scmp.eq.s32.totalorder %s18, 1
    %p71 = por %p69, %p70
    %p72 = scmp.ne.s32.totalorder %s63, %s64
    %p73 = scmp.eq.s32.totalorder %s18, 0
    %p74 = por %p72, %p73
    %p75 = scmp.ne.s32.totalorder %s63, %s64
    %p76 = scmp.eq.s32.totalorder %s19, 1
    %p77 = por %p75, %p76
    %p79 = scmp.ne.s32.totalorder %s64, %s78
    %p80 = scmp.eq.s32.totalorder %s19, 0
    %p81 = por %p79, %p80
    %s83 = sadd.s32 %s82, 1
    %p86 = scmp.eq.s32.totalorder %s13, 1
    %p87 = scmp.ne.s32.totalorder %s82, %s84
    %p88 = scmp.eq.s32.totalorder %s13, 0
    %p89 = por %p87, %p88
    %p90 = scmp.ne.s32.totalorder %s82, %s84
    %p91 = scmp.eq.s32.totalorder %s18, 1
    %p92 = por %p90, %p91
    %p93 = scmp.ne.s32.totalorder %s84, %s85
    %p94 = scmp.eq.s32.totalorder %s18, 0
    %p95 = por %p93, %p94
    %p96 = scmp.ne.s32.totalorder %s84, %s85
    %p97 = scmp.eq.s32.totalorder %s19, 1
    %p98 = por %p96, %p97
    %p100 = scmp.ne.s32.totalorder %s85, %s99
    %p101 = scmp.eq.s32.totalorder %s19, 0
    %p102 = por %p100, %p101
    %s104 = sadd.s32 %s103, 1
    %p107 = scmp.eq.s32.totalorder %s13, 1
    %p108 = scmp.ne.s32.totalorder %s103, %s105
    %p109 = scmp.eq.s32.totalorder %s13, 0
    %p110 = por %p108, %p109
    %p111 = scmp.ne.s32.totalorder %s103, %s105
    %p112 = scmp.eq.s32.totalorder %s18, 1
    %p113 = por %p111, %p112
    %p114 = scmp.ne.s32.totalorder %s105, %s106
    %p115 = scmp.eq.s32.totalorder %s18, 0
    %p116 = por %p114, %p115
    %p117 = scmp.ne.s32.totalorder %s105, %s106
    %p118 = scmp.eq.s32.totalorder %s19, 1
    %p119 = por %p117, %p118
    %p121 = scmp.ne.s32.totalorder %s106, %s120
    %p122 = scmp.eq.s32.totalorder %s19, 0
    %p123 = por %p121, %p122
    %s125 = sadd.s32 %s124, 1
    %p128 = scmp.eq.s32.totalorder %s13, 1
    %p129 = scmp.ne.s32.totalorder %s124, %s126
    %p130 = scmp.eq.s32.totalorder %s13, 0
    %p131 = por %p129, %p130
    %p132 = scmp.ne.s32.totalorder %s124, %s126
    %p133 = scmp.eq.s32.totalorder %s18, 1
    %p134 = por %p132, %p133
    %p135 = scmp.ne.s32.totalorder %s126, %s127
    %p136 = scmp.eq.s32.totalorder %s18, 0
    %p137 = por %p135, %p136
    %p138 = scmp.ne.s32.totalorder %s126, %s127
    %p139 = scmp.eq.s32.totalorder %s19, 1
    %p140 = por %p138, %p139
    %p142 = scmp.ne.s32.totalorder %s127, %s141
    %p143 = scmp.eq.s32.totalorder %s19, 0
    %p144 = por %p142, %p143
    %s146 = sadd.s32 %s145, 1
    %p149 = scmp.eq.s32.totalorder %s13, 1
    %p150 = scmp.ne.s32.totalorder %s145, %s147
    %p151 = scmp.eq.s32.totalorder %s13, 0
    %p152 = por %p150, %p151
    %p153 = scmp.ne.s32.totalorder %s145, %s147
    %p154 = scmp.eq.s32.totalorder %s18, 1
    %p155 = por %p153, %p154
    %p156 = scmp.ne.s32.totalorder %s147, %s148
    %p157 = scmp.eq.s32.totalorder %s18, 0
    %p158 = por %p156, %p157
    %p159 = scmp.ne.s32.totalorder %s147, %s148
    %p160 = scmp.eq.s32.totalorder %s19, 1
    %p161 = por %p159, %p160
    %p163 = scmp.ne.s32.totalorder %s148, %s162
    %p164 = scmp.eq.s32.totalorder %s19, 0
    %p165 = por %p163, %p164
    %s167 = sadd.s32 %s166, 1
    %p170 = scmp.eq.s32.totalorder %s13, 1
    %p171 = scmp.ne.s32.totalorder %s166, %s168
    %p172 = scmp.eq.s32.totalorder %s13, 0
    %p173 = por %p171, %p172
    %p174 = scmp.ne.s32.totalorder %s166, %s168
    %p175 = scmp.eq.s32.totalorder %s18, 1
    %p176 = por %p174, %p175
    %p177 = scmp.ne.s32.totalorder %s168, %s169
    %p178 = scmp.eq.s32.totalorder %s18, 0
    %p179 = por %p177, %p178
    %p180 = scmp.ne.s32.totalorder %s168, %s169
    %p181 = scmp.eq.s32.totalorder %s19, 1
    %p182 = por %p180, %p181
    %p184 = scmp.ne.s32.totalorder %s169, %s183
    %p185 = scmp.eq.s32.totalorder %s19, 0
    %p186 = por %p184, %p185
    %s187 = ssub.s32 %s20, %s32
    %s188 = ssub.s32 %s21, %s28
    %s189 = sor.u32 %s187, %s188
    %p190 = scmp.eq.s32.totalorder %s189, 0
    %s192 = sadd.s32 %s191, 1
    %s193 = scalar_select %p190, %s191, %s192
    %p196 = pneg %p190
    %p197 = scmp.eq.s32.totalorder %s13, 1
    %p198 = por %p196, %p197
    %p199 = scmp.ne.s32.totalorder %s191, %s194
    %p200 = scmp.eq.s32.totalorder %s13, 0
    %p201 = por %p199, %p200
    %p202 = scmp.ne.s32.totalorder %s191, %s194
    %p203 = scmp.eq.s32.totalorder %s18, 1
    %p204 = por %p202, %p203
    %p205 = scmp.ne.s32.totalorder %s194, %s195
    %p206 = scmp.eq.s32.totalorder %s18, 0
    %p207 = por %p205, %p206
    %p208 = scmp.ne.s32.totalorder %s194, %s195
    %p209 = scmp.eq.s32.totalorder %s19, 1
    %p210 = por %p208, %p209
    %p212 = scmp.ne.s32.totalorder %s195, %s211
    %p213 = scmp.eq.s32.totalorder %s19, 0
    %p214 = por %p212, %p213
    %p215 = scmp.le.s32.totalorder 1, %s13
    %p216 = scmp.lt.s32.totalorder %s13, 3
    %p217 = pnand %p215, %p216
    %p218 = pneg %p217
    // Predicated region
    $region9: #{regressor_forward.1} parent=5 // pred_check
      _
    $region10: #{regressor_forward.1} parent=5 // pred_check_branch
      %220 = sbr.rel (%p217) target = $region12
    $region11: #{regressor_forward.1} parent=5 // pred_region
      %s221 = ssub.s32 %s13, 1
      // Predicated region
      $region13: #{regressor_forward.1} parent=11 // pred_check
        %p222 = pneg %p74
      $region14: #{regressor_forward.1} parent=11 // pred_check_branch
        %224 = sbr.rel (%p222) target = $region16
      $region15: #{regressor_forward.1} parent=11 // pred_region
        _
      $region16: #{regressor_forward.1} parent=11 // pred_fallthru
        _
      // Predicated region
      $region17: #{regressor_forward.1} parent=11 // pred_check
        %p225 = pneg %p95
      $region18: #{regressor_forward.1} parent=11 // pred_check_branch
        %227 = sbr.rel (%p225) target = $region20
      $region19: #{regressor_forward.1} parent=11 // pred_region
        _
      $region20: #{regressor_forward.1} parent=11 // pred_fallthru
        _
      // Predicated region
      $region21: #{regressor_forward.1} parent=11 // pred_check
        %p228 = pneg %p116
      $region22: #{regressor_forward.1} parent=11 // pred_check_branch
        %230 = sbr.rel (%p228) target = $region24
      $region23: #{regressor_forward.1} parent=11 // pred_region
        _
      $region24: #{regressor_forward.1} parent=11 // pred_fallthru
        _
      // Predicated region
      $region25: #{regressor_forward.1} parent=11 // pred_check
        %p231 = pneg %p137
      $region26: #{regressor_forward.1} parent=11 // pred_check_branch
        %233 = sbr.rel (%p231) target = $region28
      $region27: #{regressor_forward.1} parent=11 // pred_region
        _
      $region28: #{regressor_forward.1} parent=11 // pred_fallthru
        _
      // Predicated region
      $region29: #{regressor_forward.1} parent=11 // pred_check
        %p234 = pneg %p158
      $region30: #{regressor_forward.1} parent=11 // pred_check_branch
        %236 = sbr.rel (%p234) target = $region32
      $region31: #{regressor_forward.1} parent=11 // pred_region
        _
      $region32: #{regressor_forward.1} parent=11 // pred_fallthru
        _
      // Predicated region
      $region33: #{regressor_forward.1} parent=11 // pred_check
        %p237 = pneg %p179
      $region34: #{regressor_forward.1} parent=11 // pred_check_branch
        %239 = sbr.rel (%p237) target = $region36
      $region35: #{regressor_forward.1} parent=11 // pred_region
        _
      $region36: #{regressor_forward.1} parent=11 // pred_fallthru
        _
    $region12: #{regressor_forward.1} parent=5 // pred_fallthru
      _
    %p240 = scmp.lt.s32.totalorder %s13, 2
    // Predicated region
    $region37: #{regressor_forward.1} parent=5 // pred_check
      %p241 = pneg %p240
    $region38: #{regressor_forward.1} parent=5 // pred_check_branch
      %243 = sbr.rel (%p241) target = $region40
    $region39: #{regressor_forward.1} parent=5 // pred_region
      // Predicated region
      $region41: #{regressor_forward.1} parent=39 // pred_check
        %p244 = pneg %p47
      $region42: #{regressor_forward.1} parent=39 // pred_check_branch
        %246 = sbr.rel (%p244) target = $region44
      $region43: #{regressor_forward.1} parent=39 // pred_region
        %p247 = scmp.lt.s32.totalorder %s20, 1
        %s248 = scalar_select %p247, %s20, 1
        %p249 = scmp.lt.s32.totalorder %s21, 0
        %s250 = scalar_select %p249, %s21, 0
        %s251 = smul.addr %s248, 16
        %s252 = sadd.s32 %s250, %s251
        %s253 = smul.addr %s252, 8
        %s254 = scalar_lea.vmem %s0, %s253
      $region44: #{regressor_forward.1} parent=39 // pred_fallthru
        _
    $region40: #{regressor_forward.1} parent=5 // pred_fallthru
      _
    %p255 = scmp.le.s32.totalorder 1, %s13
    %p256 = scmp.lt.s32.totalorder %s13, 3
    %p257 = pnand %p255, %p256
    %p258 = pneg %p257
    // Predicated region
    $region45: #{regressor_forward.1} parent=5 // pred_check
      _
    $region46: #{regressor_forward.1} parent=5 // pred_check_branch
      %260 = sbr.rel (%p257) target = $region48
    $region47: #{regressor_forward.1} parent=5 // pred_region
      %s261 = ssub.s32 %s13, 1
      %p262 = scmp.lt.s32.totalorder %s22, 1
      %s263 = scalar_select %p262, %s22, 1
      %p264 = scmp.lt.s32.totalorder %s23, 0
      %s265 = scalar_select %p264, %s23, 0
      %s266 = smul.addr %s263, 16
      %s267 = sadd.s32 %s265, %s266
      %s268 = smul.addr %s267, 8
      %s269 = scalar_lea.vmem %s0, %s268
      %p270 = pneg %p53
      %p271 = pneg %p50
      %p272 = pneg %p74
      %p273 = pneg %p71
      %p274 = pneg %p95
      %p275 = pneg %p92
      %p276 = pneg %p116
      %p277 = pneg %p113
      %p278 = pneg %p137
      %p279 = pneg %p134
      %p280 = pneg %p158
      %p281 = pneg %p155
      %p282 = pneg %p179
      %p283 = pneg %p176
      %p284 = pneg %p207
      %p285 = pneg %p204
      %p286 = scmp.lt.s32.totalorder %s22, 1
      %s287 = scalar_select %p286, %s22, 1
      %p288 = scmp.lt.s32.totalorder %s23, 0
      %s289 = scalar_select %p288, %s23, 0
      %s290 = sadd.s32 %s289, %s287
      %s291 = smul.addr %s290, 4
      %s292 = scalar_lea.vmem %s7, %s291
      %p293 = scmp.lt.s32.totalorder %s22, 1
      %s294 = scalar_select %p293, %s22, 1
      %p295 = scmp.lt.s32.totalorder %s23, 0
      %s296 = scalar_select %p295, %s23, 0
      %s297 = smul.addr %s294, 16
      %s298 = sadd.s32 %s296, %s297
      %s299 = smul.addr %s298, 8
      %s300 = scalar_lea.vmem %s0, %s299
      %p301 = scmp.lt.s32.totalorder %s22, 1
      %s302 = scalar_select %p301, %s22, 1
      %p303 = scmp.lt.s32.totalorder %s23, 0
      %s304 = scalar_select %p303, %s23, 0
      %s305 = sadd.s32 %s304, %s302
      %s306 = smul.addr %s305, 4
      %s307 = scalar_lea.vmem %s7, %s306
      %v308 = vld [vmem:[%s300] sm:$0xff]
      %v309 = vld [vmem:[%s300 + $0x8] sm:$0xff]
      %v310 = vld [vmem:[%s300 + $0x10] sm:$0xff]
      %v311 = vld [vmem:[%s300 + $0x18] sm:$0xff]
      %v312 = vld [vmem:[%s300 + $0x20] sm:$0xff]
      %v313 = vld [vmem:[%s300 + $0x28] sm:$0xff]
      %v314 = vld [vmem:[%s300 + $0x30] sm:$0xff]
      %v315 = vld [vmem:[%s300 + $0x38] sm:$0xff]
      %v316 = vld [vmem:[%s300 + $0x40] sm:$0xff]
      %v317 = vld [vmem:[%s300 + $0x48] sm:$0xff]
      %v318 = vld [vmem:[%s300 + $0x50] sm:$0xff]
      %v319 = vld [vmem:[%s300 + $0x58] sm:$0xff]
      %v320 = vld [vmem:[%s300 + $0x60] sm:$0xff]
      %v321 = vld [vmem:[%s300 + $0x68] sm:$0xff]
      %v322 = vld [vmem:[%s300 + $0x70] sm:$0xff]
      %v323 = vld [vmem:[%s300 + $0x78] sm:$0xff]
      %v324 = vld [vmem:[%s1] sm:$0xff]
      %v325 = vld [vmem:[%s1 + $0x8] sm:$0xff]
      %v326 = vld [vmem:[%s1 + $0x10] sm:$0xff]
      %v327 = vld [vmem:[%s1 + $0x18] sm:$0xff]
      %v328 = vld [vmem:[%s1 + $0x20] sm:$0xff]
      %v329 = vld [vmem:[%s1 + $0x28] sm:$0xff]
      %v330 = vld [vmem:[%s1 + $0x30] sm:$0xff]
      %v331 = vld [vmem:[%s1 + $0x38] sm:$0xff]
      %v332 = vld [vmem:[%s1 + $0x40] sm:$0xff]
      %v333 = vld [vmem:[%s1 + $0x48] sm:$0xff]
      %v334 = vld [vmem:[%s1 + $0x50] sm:$0xff]
      %v335 = vld [vmem:[%s1 + $0x58] sm:$0xff]
      %v336 = vld [vmem:[%s1 + $0x60] sm:$0xff]
      %v337 = vld [vmem:[%s1 + $0x68] sm:$0xff]
      %v338 = vld [vmem:[%s1 + $0x70] sm:$0xff]
      %v339 = vld [vmem:[%s1 + $0x78] sm:$0xff]
      %v340 = vld [vmem:[%s1 + $0x80] sm:$0xff]
      %v341 = vld [vmem:[%s1 + $0x88] sm:$0xff]
      %v342 = vld [vmem:[%s1 + $0x90] sm:$0xff]
      %v343 = vld [vmem:[%s1 + $0x98] sm:$0xff]
      %v344 = vld [vmem:[%s1 + $0xa0] sm:$0xff]
      %v345 = vld [vmem:[%s1 + $0xa8] sm:$0xff]
      %v346 = vld [vmem:[%s1 + $0xb0] sm:$0xff]
      %v347 = vld [vmem:[%s1 + $0xb8] sm:$0xff]
      %v348 = vld [vmem:[%s1 + $0xc0] sm:$0xff]
      %v349 = vld [vmem:[%s1 + $0xc8] sm:$0xff]
      %v350 = vld [vmem:[%s1 + $0xd0] sm:$0xff]
      %v351 = vld [vmem:[%s1 + $0xd8] sm:$0xff]
      %v352 = vld [vmem:[%s1 + $0xe0] sm:$0xff]
      %v353 = vld [vmem:[%s1 + $0xe8] sm:$0xff]
      %v354 = vld [vmem:[%s1 + $0xf0] sm:$0xff]
      %v355 = vld [vmem:[%s1 + $0xf8] sm:$0xff]
      %v356 = vld [vmem:[%s2] sm:$0xff]
      %v357 = vld [vmem:[%s2 + $0x8] sm:$0xff]
      %v358 = vld [vmem:[%s2 + $0x10] sm:$0xff]
      %v359 = vld [vmem:[%s2 + $0x18] sm:$0xff]
      %v360 = vld [vmem:[%s2 + $0x20] sm:$0xff]
      %v361 = vld [vmem:[%s2 + $0x28] sm:$0xff]
      %v362 = vld [vmem:[%s2 + $0x30] sm:$0xff]
      %v363 = vld [vmem:[%s2 + $0x38] sm:$0xff]
      %v364 = vld [vmem:[%s2 + $0x40] sm:$0xff]
      %v365 = vld [vmem:[%s2 + $0x48] sm:$0xff]
      %v366 = vld [vmem:[%s2 + $0x50] sm:$0xff]
      %v367 = vld [vmem:[%s2 + $0x58] sm:$0xff]
      %v368 = vld [vmem:[%s2 + $0x60] sm:$0xff]
      %v369 = vld [vmem:[%s2 + $0x68] sm:$0xff]
      %v370 = vld [vmem:[%s2 + $0x70] sm:$0xff]
      %v371 = vld [vmem:[%s2 + $0x78] sm:$0xff]
      %v372 = vld [vmem:[%s2 + $0x80] sm:$0xff]
      %v373 = vld [vmem:[%s2 + $0x88] sm:$0xff]
      %v374 = vld [vmem:[%s2 + $0x90] sm:$0xff]
      %v375 = vld [vmem:[%s2 + $0x98] sm:$0xff]
      %v376 = vld [vmem:[%s2 + $0xa0] sm:$0xff]
      %v377 = vld [vmem:[%s2 + $0xa8] sm:$0xff]
      %v378 = vld [vmem:[%s2 + $0xb0] sm:$0xff]
      %v379 = vld [vmem:[%s2 + $0xb8] sm:$0xff]
      %v380 = vld [vmem:[%s2 + $0xc0] sm:$0xff]
      %v381 = vld [vmem:[%s2 + $0xc8] sm:$0xff]
      %v382 = vld [vmem:[%s2 + $0xd0] sm:$0xff]
      %v383 = vld [vmem:[%s2 + $0xd8] sm:$0xff]
      %v384 = vld [vmem:[%s2 + $0xe0] sm:$0xff]
      %v385 = vld [vmem:[%s2 + $0xe8] sm:$0xff]
      %v386 = vld [vmem:[%s2 + $0xf0] sm:$0xff]
      %v387 = vld [vmem:[%s2 + $0xf8] sm:$0xff]
      %389 = vset.pattern.permute.xlu0 0
      %390 = vperm.xlu0 %389, %v356
      %v391 = vpop.permute.xlu0 %390
      %394 = vset.pattern.permute.xlu0 0
      %395 = vperm.xlu0 %394, %v357
      %v396 = vpop.permute.xlu0 %395
      %399 = vset.pattern.permute.xlu0 0
      %400 = vperm.xlu0 %399, %v358
      %v401 = vpop.permute.xlu0 %400
      %404 = vset.pattern.permute.xlu0 0
      %405 = vperm.xlu0 %404, %v359
      %v406 = vpop.permute.xlu0 %405
      %409 = vset.pattern.permute.xlu0 0
      %410 = vperm.xlu0 %409, %v360
      %v411 = vpop.permute.xlu0 %410
      %414 = vset.pattern.permute.xlu0 0
      %415 = vperm.xlu0 %414, %v361
      %v416 = vpop.permute.xlu0 %415
      %419 = vset.pattern.permute.xlu0 0
      %420 = vperm.xlu0 %419, %v362
      %v421 = vpop.permute.xlu0 %420
      %424 = vset.pattern.permute.xlu0 0
      %425 = vperm.xlu0 %424, %v363
      %v426 = vpop.permute.xlu0 %425
      %429 = vset.pattern.permute.xlu0 0
      %430 = vperm.xlu0 %429, %v364
      %v431 = vpop.permute.xlu0 %430
      %434 = vset.pattern.permute.xlu0 0
      %435 = vperm.xlu0 %434, %v365
      %v436 = vpop.permute.xlu0 %435
      %439 = vset.pattern.permute.xlu0 0
      %440 = vperm.xlu0 %439, %v366
      %v441 = vpop.permute.xlu0 %440
      %444 = vset.pattern.permute.xlu0 0
      %445 = vperm.xlu0 %444, %v367
      %v446 = vpop.permute.xlu0 %445
      %449 = vset.pattern.permute.xlu0 0
      %450 = vperm.xlu0 %449, %v368
      %v451 = vpop.permute.xlu0 %450
      %454 = vset.pattern.permute.xlu0 0
      %455 = vperm.xlu0 %454, %v369
      %v456 = vpop.permute.xlu0 %455
      %459 = vset.pattern.permute.xlu0 0
      %460 = vperm.xlu0 %459, %v370
      %v461 = vpop.permute.xlu0 %460
      %464 = vset.pattern.permute.xlu0 0
      %465 = vperm.xlu0 %464, %v371
      %v466 = vpop.permute.xlu0 %465
      %469 = vset.pattern.permute.xlu0 0
      %470 = vperm.xlu0 %469, %v372
      %v471 = vpop.permute.xlu0 %470
      %474 = vset.pattern.permute.xlu0 0
      %475 = vperm.xlu0 %474, %v373
      %v476 = vpop.permute.xlu0 %475
      %479 = vset.pattern.permute.xlu0 0
      %480 = vperm.xlu0 %479, %v374
      %v481 = vpop.permute.xlu0 %480
      %484 = vset.pattern.permute.xlu0 0
      %485 = vperm.xlu0 %484, %v375
      %v486 = vpop.permute.xlu0 %485
      %489 = vset.pattern.permute.xlu0 0
      %490 = vperm.xlu0 %489, %v376
      %v491 = vpop.permute.xlu0 %490
      %494 = vset.pattern.permute.xlu0 0
      %495 = vperm.xlu0 %494, %v377
      %v496 = vpop.permute.xlu0 %495
      %499 = vset.pattern.permute.xlu0 0
      %500 = vperm.xlu0 %499, %v378
      %v501 = vpop.permute.xlu0 %500
      %504 = vset.pattern.permute.xlu0 0
      %505 = vperm.xlu0 %504, %v379
      %v506 = vpop.permute.xlu0 %505
      %509 = vset.pattern.permute.xlu0 0
      %510 = vperm.xlu0 %509, %v380
      %v511 = vpop.permute.xlu0 %510
      %514 = vset.pattern.permute.xlu0 0
      %515 = vperm.xlu0 %514, %v381
      %v516 = vpop.permute.xlu0 %515
      %519 = vset.pattern.permute.xlu0 0
      %520 = vperm.xlu0 %519, %v382
      %v521 = vpop.permute.xlu0 %520
      %524 = vset.pattern.permute.xlu0 0
      %525 = vperm.xlu0 %524, %v383
      %v526 = vpop.permute.xlu0 %525
      %529 = vset.pattern.permute.xlu0 0
      %530 = vperm.xlu0 %529, %v384
      %v531 = vpop.permute.xlu0 %530
      %534 = vset.pattern.permute.xlu0 0
      %535 = vperm.xlu0 %534, %v385
      %v536 = vpop.permute.xlu0 %535
      %539 = vset.pattern.permute.xlu0 0
      %540 = vperm.xlu0 %539, %v386
      %v541 = vpop.permute.xlu0 %540
      %544 = vset.pattern.permute.xlu0 0
      %545 = vperm.xlu0 %544, %v387
      %v546 = vpop.permute.xlu0 %545
      %548 = vmatprep.subr.mxu0 0.0
      %549 = vmatpush1.msra.mxu0 %v308
      %550 = vmatprep.subr.mxu0 0.0
      %551 = vmatpush1.msra.mxu0 %v309
      %552 = vmatprep.subr.mxu0 0.0
      %553 = vmatpush1.msra.mxu0 %v310
      %554 = vmatprep.subr.mxu0 0.0
      %555 = vmatpush1.msra.mxu0 %v311
      %556 = vmatprep.subr.mxu0 0.0
      %557 = vmatpush1.msra.mxu0 %v312
      %558 = vmatprep.subr.mxu0 0.0
      %559 = vmatpush1.msra.mxu0 %v313
      %560 = vmatprep.subr.mxu0 0.0
      %561 = vmatpush1.msra.mxu0 %v314
      %562 = vmatprep.subr.mxu0 0.0
      %563 = vmatpush1.msra.mxu0 %v315
      %564 = vmatprep.subr.mxu0 0.0
      %565 = vmatpush1.msra.mxu0 %v316
      %566 = vmatprep.subr.mxu0 0.0
      %567 = vmatpush1.msra.mxu0 %v317
      %568 = vmatprep.subr.mxu0 0.0
      %569 = vmatpush1.msra.mxu0 %v318
      %570 = vmatprep.subr.mxu0 0.0
      %571 = vmatpush1.msra.mxu0 %v319
      %572 = vmatprep.subr.mxu0 0.0
      %573 = vmatpush1.msra.mxu0 %v320
      %574 = vmatprep.subr.mxu0 0.0
      %575 = vmatpush1.msra.mxu0 %v321
      %576 = vmatprep.subr.mxu0 0.0
      %577 = vmatpush1.msra.mxu0 %v322
      %578 = vmatprep.subr.mxu0 0.0
      %579 = vmatpush1.msra.mxu0 %v323
      %580 = vmatprep.subr.mxu0 0.0
      %581 = vmatpush1.msra.mxu0 0.0
      %582 = vmatprep.subr.mxu0 0.0
      %583 = vmatpush1.msra.mxu0 0.0
      %584 = vmatprep.subr.mxu0 0.0
      %585 = vmatpush1.msra.mxu0 0.0
      %586 = vmatprep.subr.mxu0 0.0
      %587 = vmatpush1.msra.mxu0 0.0
      %588 = vmatprep.subr.mxu0 0.0
      %589 = vmatpush1.msra.mxu0 0.0
      %590 = vmatprep.subr.mxu0 0.0
      %591 = vmatpush1.msra.mxu0 0.0
      %592 = vmatprep.subr.mxu0 0.0
      %593 = vmatpush1.msra.mxu0 0.0
      %594 = vmatprep.subr.mxu0 0.0
      %595 = vmatpush1.msra.mxu0 0.0
      %596 = vmatprep.subr.mxu0 0.0
      %597 = vmatpush1.msra.mxu0 0.0
      %598 = vmatprep.subr.mxu0 0.0
      %599 = vmatpush1.msra.mxu0 0.0
      %600 = vmatprep.subr.mxu0 0.0
      %601 = vmatpush1.msra.mxu0 0.0
      %602 = vmatprep.subr.mxu0 0.0
      %603 = vmatpush1.msra.mxu0 0.0
      %604 = vmatprep.subr.mxu0 0.0
      %605 = vmatpush1.msra.mxu0 0.0
      %606 = vmatprep.subr.mxu0 0.0
      %607 = vmatpush1.msra.mxu0 0.0
      %608 = vmatprep.subr.mxu0 0.0
      %609 = vmatpush1.msra.mxu0 0.0
      %610 = vmatprep.subr.mxu0 0.0
      %611 = vmatpush1.msra.mxu0 0.0
      %612 = vmatprep.mubr.f32.mxu0 0.0
      %613 = vmatmul.mubr.f32.gmra.mrb[0].mxu0 %v324
      %v614 = vpop.f32.mrb[0].mxu0
      %v615 = vadd.f32 %v391, %v614
      %v616 = vpop.f32.mrb[0].mxu0
      %617 = vmatprep.mubr.f32.mxu0 0.0
      %618 = vmatmul.mubr.f32.gmra.mrb[0].mxu0 %v325
      %v619 = vpop.f32.mrb[0].mxu0
      %v620 = vadd.f32 %v396, %v619
      %v621 = vpop.f32.mrb[0].mxu0
      %622 = vmatprep.mubr.f32.mxu0 0.0
      %623 = vmatmul.mubr.f32.gmra.mrb[0].mxu0 %v326
      %v624 = vpop.f32.mrb[0].mxu0
      %v625 = vadd.f32 %v401, %v624
      %v626 = vpop.f32.mrb[0].mxu0
      %627 = vmatprep.mubr.f32.mxu0 0.0
      %628 = vmatmul.mubr.f32.gmra.mrb[0].mxu0 %v327
      %v629 = vpop.f32.mrb[0].mxu0
      %v630 = vadd.f32 %v406, %v629
      %v631 = vpop.f32.mrb[0].mxu0
      %632 = vmatprep.mubr.f32.mxu0 0.0
      %633 = vmatmul.mubr.f32.gmra.mrb[0].mxu0 %v328
      %v634 = vpop.f32.mrb[0].mxu0
      %v635 = vadd.f32 %v411, %v634
      %v636 = vpop.f32.mrb[0].mxu0
      %637 = vmatprep.mubr.f32.mxu0 0.0
      %638 = vmatmul.mubr.f32.gmra.mrb[0].mxu0 %v329
      %v639 = vpop.f32.mrb[0].mxu0
      %v640 = vadd.f32 %v416, %v639
      %v641 = vpop.f32.mrb[0].mxu0
      %642 = vmatprep.mubr.f32.mxu0 0.0
      %643 = vmatmul.mubr.f32.gmra.mrb[0].mxu0 %v330
      %v644 = vpop.f32.mrb[0].mxu0
      %v645 = vadd.f32 %v421, %v644
      %v646 = vpop.f32.mrb[0].mxu0
      %647 = vmatprep.mubr.f32.mxu0 0.0
      %648 = vmatmul.mubr.f32.gmra.mrb[0].mxu0 %v331
      %v649 = vpop.f32.mrb[0].mxu0
      %v650 = vadd.f32 %v426, %v649
      %v651 = vpop.f32.mrb[0].mxu0
      %652 = vmatprep.mubr.f32.mxu0 0.0
      %653 = vmatmul.mubr.f32.gmra.mrb[0].mxu0 %v332
      %v654 = vpop.f32.mrb[0].mxu0
      %v655 = vadd.f32 %v431, %v654
      %v656 = vpop.f32.mrb[0].mxu0
      %657 = vmatprep.mubr.f32.mxu0 0.0
      %658 = vmatmul.mubr.f32.gmra.mrb[0].mxu0 %v333
      %v659 = vpop.f32.mrb[0].mxu0
      %v660 = vadd.f32 %v436, %v659
      %v661 = vpop.f32.mrb[0].mxu0
      %662 = vmatprep.mubr.f32.mxu0 0.0
      %663 = vmatmul.mubr.f32.gmra.mrb[0].mxu0 %v334
      %v664 = vpop.f32.mrb[0].mxu0
      %v665 = vadd.f32 %v441, %v664
      %v666 = vpop.f32.mrb[0].mxu0
      %667 = vmatprep.mubr.f32.mxu0 0.0
      %668 = vmatmul.mubr.f32.gmra.mrb[0].mxu0 %v335
      %v669 = vpop.f32.mrb[0].mxu0
      %v670 = vadd.f32 %v446, %v669
      %v671 = vpop.f32.mrb[0].mxu0
      %672 = vmatprep.mubr.f32.mxu0 0.0
      %673 = vmatmul.mubr.f32.gmra.mrb[0].mxu0 %v336
      %v674 = vpop.f32.mrb[0].mxu0
      %v675 = vadd.f32 %v451, %v674
      %v676 = vpop.f32.mrb[0].mxu0
      %677 = vmatprep.mubr.f32.mxu0 0.0
      %678 = vmatmul.mubr.f32.gmra.mrb[0].mxu0 %v337
      %v679 = vpop.f32.mrb[0].mxu0
      %v680 = vadd.f32 %v456, %v679
      %v681 = vpop.f32.mrb[0].mxu0
      %682 = vmatprep.mubr.f32.mxu0 0.0
      %683 = vmatmul.mubr.f32.gmra.mrb[0].mxu0 %v338
      %v684 = vpop.f32.mrb[0].mxu0
      %v685 = vadd.f32 %v461, %v684
      %v686 = vpop.f32.mrb[0].mxu0
      %687 = vmatprep.mubr.f32.mxu0 0.0
      %688 = vmatmul.mubr.f32.gmra.mrb[0].mxu0 %v339
      %v689 = vpop.f32.mrb[0].mxu0
      %v690 = vadd.f32 %v466, %v689
      %v691 = vpop.f32.mrb[0].mxu0
      %692 = vmatprep.mubr.f32.mxu0 0.0
      %693 = vmatmul.mubr.f32.gmra.mrb[0].mxu0 %v340
      %v694 = vpop.f32.mrb[0].mxu0
      %v695 = vadd.f32 %v471, %v694
      %v696 = vpop.f32.mrb[0].mxu0
      %697 = vmatprep.mubr.f32.mxu0 0.0
      %698 = vmatmul.mubr.f32.gmra.mrb[0].mxu0 %v341
      %v699 = vpop.f32.mrb[0].mxu0
      %v700 = vadd.f32 %v476, %v699
      %v701 = vpop.f32.mrb[0].mxu0
      %702 = vmatprep.mubr.f32.mxu0 0.0
      %703 = vmatmul.mubr.f32.gmra.mrb[0].mxu0 %v342
      %v704 = vpop.f32.mrb[0].mxu0
      %v705 = vadd.f32 %v481, %v704
      %v706 = vpop.f32.mrb[0].mxu0
      %707 = vmatprep.mubr.f32.mxu0 0.0
      %708 = vmatmul.mubr.f32.gmra.mrb[0].mxu0 %v343
      %v709 = vpop.f32.mrb[0].mxu0
      %v710 = vadd.f32 %v486, %v709
      %v711 = vpop.f32.mrb[0].mxu0
      %712 = vmatprep.mubr.f32.mxu0 0.0
      %713 = vmatmul.mubr.f32.gmra.mrb[0].mxu0 %v344
      %v714 = vpop.f32.mrb[0].mxu0
      %v715 = vadd.f32 %v491, %v714
      %v716 = vpop.f32.mrb[0].mxu0
      %717 = vmatprep.mubr.f32.mxu0 0.0
      %718 = vmatmul.mubr.f32.gmra.mrb[0].mxu0 %v345
      %v719 = vpop.f32.mrb[0].mxu0
      %v720 = vadd.f32 %v496, %v719
      %v721 = vpop.f32.mrb[0].mxu0
      %722 = vmatprep.mubr.f32.mxu0 0.0
      %723 = vmatmul.mubr.f32.gmra.mrb[0].mxu0 %v346
      %v724 = vpop.f32.mrb[0].mxu0
      %v725 = vadd.f32 %v501, %v724
      %v726 = vpop.f32.mrb[0].mxu0
      %727 = vmatprep.mubr.f32.mxu0 0.0
      %728 = vmatmul.mubr.f32.gmra.mrb[0].mxu0 %v347
      %v729 = vpop.f32.mrb[0].mxu0
      %v730 = vadd.f32 %v506, %v729
      %v731 = vpop.f32.mrb[0].mxu0
      %732 = vmatprep.mubr.f32.mxu0 0.0
      %733 = vmatmul.mubr.f32.gmra.mrb[0].mxu0 %v348
      %v734 = vpop.f32.mrb[0].mxu0
      %v735 = vadd.f32 %v511, %v734
      %v736 = vpop.f32.mrb[0].mxu0
      %737 = vmatprep.mubr.f32.mxu0 0.0
      %738 = vmatmul.mubr.f32.gmra.mrb[0].mxu0 %v349
      %v739 = vpop.f32.mrb[0].mxu0
      %v740 = vadd.f32 %v516, %v739
      %v741 = vpop.f32.mrb[0].mxu0
      %742 = vmatprep.mubr.f32.mxu0 0.0
      %743 = vmatmul.mubr.f32.gmra.mrb[0].mxu0 %v350
      %v744 = vpop.f32.mrb[0].mxu0
      %v745 = vadd.f32 %v521, %v744
      %v746 = vpop.f32.mrb[0].mxu0
      %747 = vmatprep.mubr.f32.mxu0 0.0
      %748 = vmatmul.mubr.f32.gmra.mrb[0].mxu0 %v351
      %v749 = vpop.f32.mrb[0].mxu0
      %v750 = vadd.f32 %v526, %v749
      %v751 = vpop.f32.mrb[0].mxu0
      %752 = vmatprep.mubr.f32.mxu0 0.0
      %753 = vmatmul.mubr.f32.gmra.mrb[0].mxu0 %v352
      %v754 = vpop.f32.mrb[0].mxu0
      %v755 = vadd.f32 %v531, %v754
      %v756 = vpop.f32.mrb[0].mxu0
      %757 = vmatprep.mubr.f32.mxu0 0.0
      %758 = vmatmul.mubr.f32.gmra.mrb[0].mxu0 %v353
      %v759 = vpop.f32.mrb[0].mxu0
      %v760 = vadd.f32 %v536, %v759
      %v761 = vpop.f32.mrb[0].mxu0
      %762 = vmatprep.mubr.f32.mxu0 0.0
      %763 = vmatmul.mubr.f32.gmra.mrb[0].mxu0 %v354
      %v764 = vpop.f32.mrb[0].mxu0
      %v765 = vadd.f32 %v541, %v764
      %v766 = vpop.f32.mrb[0].mxu0
      %767 = vmatprep.mubr.f32.mxu0 0.0
      %768 = vmatmul.mubr.f32.gmra.mrb[0].mxu0 %v355
      %v769 = vpop.f32.mrb[0].mxu0
      %v770 = vadd.f32 %v546, %v769
      %v771 = vpop.f32.mrb[0].mxu0
      %772 = vdwg.mxu0
      %v773 = vmax.f32 %v615, 0.0
      %v774 = vmax.f32 %v620, 0.0
      %v775 = vmax.f32 %v625, 0.0
      %v776 = vmax.f32 %v630, 0.0
      %v777 = vmax.f32 %v635, 0.0
      %v778 = vmax.f32 %v640, 0.0
      %v779 = vmax.f32 %v645, 0.0
      %v780 = vmax.f32 %v650, 0.0
      %v781 = vmax.f32 %v655, 0.0
      %v782 = vmax.f32 %v660, 0.0
      %v783 = vmax.f32 %v665, 0.0
      %v784 = vmax.f32 %v670, 0.0
      %v785 = vmax.f32 %v675, 0.0
      %v786 = vmax.f32 %v680, 0.0
      %v787 = vmax.f32 %v685, 0.0
      %v788 = vmax.f32 %v690, 0.0
      %v789 = vmax.f32 %v695, 0.0
      %v790 = vmax.f32 %v700, 0.0
      %v791 = vmax.f32 %v705, 0.0
      %v792 = vmax.f32 %v710, 0.0
      %v793 = vmax.f32 %v715, 0.0
      %v794 = vmax.f32 %v720, 0.0
      %v795 = vmax.f32 %v725, 0.0
      %v796 = vmax.f32 %v730, 0.0
      %v797 = vmax.f32 %v735, 0.0
      %v798 = vmax.f32 %v740, 0.0
      %v799 = vmax.f32 %v745, 0.0
      %v800 = vmax.f32 %v750, 0.0
      %v801 = vmax.f32 %v755, 0.0
      %v802 = vmax.f32 %v760, 0.0
      %v803 = vmax.f32 %v765, 0.0
      %v804 = vmax.f32 %v770, 0.0
      %v805 = vld [vmem:[%s3] sm:$0xff]
      %v806 = vld [vmem:[%s3 + $0x8] sm:$0xff]
      %v807 = vld [vmem:[%s3 + $0x10] sm:$0xff]
      %v808 = vld [vmem:[%s3 + $0x18] sm:$0xff]
      %v809 = vld [vmem:[%s3 + $0x20] sm:$0xff]
      %v810 = vld [vmem:[%s3 + $0x28] sm:$0xff]
      %v811 = vld [vmem:[%s3 + $0x30] sm:$0xff]
      %v812 = vld [vmem:[%s3 + $0x38] sm:$0xff]
      %v813 = vld [vmem:[%s3 + $0x40] sm:$0xff]
      %v814 = vld [vmem:[%s3 + $0x48] sm:$0xff]
      %v815 = vld [vmem:[%s3 + $0x50] sm:$0xff]
      %v816 = vld [vmem:[%s3 + $0x58] sm:$0xff]
      %v817 = vld [vmem:[%s3 + $0x60] sm:$0xff]
      %v818 = vld [vmem:[%s3 + $0x68] sm:$0xff]
      %v819 = vld [vmem:[%s3 + $0x70] sm:$0xff]
      %v820 = vld [vmem:[%s3 + $0x78] sm:$0xff]
      %v821 = vld [vmem:[%s4] sm:$0xff]
      %v822 = vld [vmem:[%s4 + $0x8] sm:$0xff]
      %v823 = vld [vmem:[%s4 + $0x10] sm:$0xff]
      %v824 = vld [vmem:[%s4 + $0x18] sm:$0xff]
      %v825 = vld [vmem:[%s4 + $0x20] sm:$0xff]
      %v826 = vld [vmem:[%s4 + $0x28] sm:$0xff]
      %v827 = vld [vmem:[%s4 + $0x30] sm:$0xff]
      %v828 = vld [vmem:[%s4 + $0x38] sm:$0xff]
      %830 = vset.pattern.permute.xlu0 0
      %831 = vperm.xlu0 %830, %v821
      %v832 = vpop.permute.xlu0 %831
      %835 = vset.pattern.permute.xlu0 0
      %836 = vperm.xlu0 %835, %v822
      %v837 = vpop.permute.xlu0 %836
      %840 = vset.pattern.permute.xlu0 0
      %841 = vperm.xlu0 %840, %v823
      %v842 = vpop.permute.xlu0 %841
      %845 = vset.pattern.permute.xlu0 0
      %846 = vperm.xlu0 %845, %v824
      %v847 = vpop.permute.xlu0 %846
      %850 = vset.pattern.permute.xlu0 0
      %851 = vperm.xlu0 %850, %v825
      %v852 = vpop.permute.xlu0 %851
      %855 = vset.pattern.permute.xlu0 0
      %856 = vperm.xlu0 %855, %v826
      %v857 = vpop.permute.xlu0 %856
      %860 = vset.pattern.permute.xlu0 0
      %861 = vperm.xlu0 %860, %v827
      %v862 = vpop.permute.xlu0 %861
      %865 = vset.pattern.permute.xlu0 0
      %866 = vperm.xlu0 %865, %v828
      %v867 = vpop.permute.xlu0 %866
      %869 = vmatprep.subr.mxu0 0.0
      %870 = vmatpush1.msra.mxu0 %v773
      %871 = vmatprep.subr.mxu0 0.0
      %872 = vmatpush1.msra.mxu0 %v774
      %873 = vmatprep.subr.mxu0 0.0
      %874 = vmatpush1.msra.mxu0 %v775
      %875 = vmatprep.subr.mxu0 0.0
      %876 = vmatpush1.msra.mxu0 %v776
      %877 = vmatprep.subr.mxu0 0.0
      %878 = vmatpush1.msra.mxu0 %v777
      %879 = vmatprep.subr.mxu0 0.0
      %880 = vmatpush1.msra.mxu0 %v778
      %881 = vmatprep.subr.mxu0 0.0
      %882 = vmatpush1.msra.mxu0 %v779
      %883 = vmatprep.subr.mxu0 0.0
      %884 = vmatpush1.msra.mxu0 %v780
      %885 = vmatprep.subr.mxu0 0.0
      %886 = vmatpush1.msra.mxu0 %v781
      %887 = vmatprep.subr.mxu0 0.0
      %888 = vmatpush1.msra.mxu0 %v782
      %889 = vmatprep.subr.mxu0 0.0
      %890 = vmatpush1.msra.mxu0 %v783
      %891 = vmatprep.subr.mxu0 0.0
      %892 = vmatpush1.msra.mxu0 %v784
      %893 = vmatprep.subr.mxu0 0.0
      %894 = vmatpush1.msra.mxu0 %v785
      %895 = vmatprep.subr.mxu0 0.0
      %896 = vmatpush1.msra.mxu0 %v786
      %897 = vmatprep.subr.mxu0 0.0
      %898 = vmatpush1.msra.mxu0 %v787
      %899 = vmatprep.subr.mxu0 0.0
      %900 = vmatpush1.msra.mxu0 %v788
      %901 = vmatprep.subr.mxu0 0.0
      %902 = vmatpush1.msra.mxu0 %v789
      %903 = vmatprep.subr.mxu0 0.0
      %904 = vmatpush1.msra.mxu0 %v790
      %905 = vmatprep.subr.mxu0 0.0
      %906 = vmatpush1.msra.mxu0 %v791
      %907 = vmatprep.subr.mxu0 0.0
      %908 = vmatpush1.msra.mxu0 %v792
      %909 = vmatprep.subr.mxu0 0.0
      %910 = vmatpush1.msra.mxu0 %v793
      %911 = vmatprep.subr.mxu0 0.0
      %912 = vmatpush1.msra.mxu0 %v794
      %913 = vmatprep.subr.mxu0 0.0
      %914 = vmatpush1.msra.mxu0 %v795
      %915 = vmatprep.subr.mxu0 0.0
      %916 = vmatpush1.msra.mxu0 %v796
      %917 = vmatprep.subr.mxu0 0.0
      %918 = vmatpush1.msra.mxu0 %v797
      %919 = vmatprep.subr.mxu0 0.0
      %920 = vmatpush1.msra.mxu0 %v798
      %921 = vmatprep.subr.mxu0 0.0
      %922 = vmatpush1.msra.mxu0 %v799
      %923 = vmatprep.subr.mxu0 0.0
      %924 = vmatpush1.msra.mxu0 %v800
      %925 = vmatprep.subr.mxu0 0.0
      %926 = vmatpush1.msra.mxu0 %v801
      %927 = vmatprep.subr.mxu0 0.0
      %928 = vmatpush1.msra.mxu0 %v802
      %929 = vmatprep.subr.mxu0 0.0
      %930 = vmatpush1.msra.mxu0 %v803
      %931 = vmatprep.subr.mxu0 0.0
      %932 = vmatpush1.msra.mxu0 %v804
      %933 = vmatprep.mubr.f32.mxu0 %v806
      %934 = vmatmul.mubr.f32.gmra.mrb[0].mxu0 %v805
      %v935 = vpop.f32.mrb[0].mxu0
      %v936 = vadd.f32 %v832, %v935
      %v937 = vpop.f32.mrb[0].mxu0
      %938 = vmatprep.mubr.f32.mxu0 %v808
      %939 = vmatmul.mubr.f32.gmra.mrb[0].mxu0 %v807
      %v940 = vpop.f32.mrb[0].mxu0
      %v941 = vadd.f32 %v837, %v940
      %v942 = vpop.f32.mrb[0].mxu0
      %943 = vmatprep.mubr.f32.mxu0 %v810
      %944 = vmatmul.mubr.f32.gmra.mrb[0].mxu0 %v809
      %v945 = vpop.f32.mrb[0].mxu0
      %v946 = vadd.f32 %v842, %v945
      %v947 = vpop.f32.mrb[0].mxu0
      %948 = vmatprep.mubr.f32.mxu0 %v812
      %949 = vmatmul.mubr.f32.gmra.mrb[0].mxu0 %v811
      %v950 = vpop.f32.mrb[0].mxu0
      %v951 = vadd.f32 %v847, %v950
      %v952 = vpop.f32.mrb[0].mxu0
      %953 = vmatprep.mubr.f32.mxu0 %v814
      %954 = vmatmul.mubr.f32.gmra.mrb[0].mxu0 %v813
      %v955 = vpop.f32.mrb[0].mxu0
      %v956 = vadd.f32 %v852, %v955
      %v957 = vpop.f32.mrb[0].mxu0
      %958 = vmatprep.mubr.f32.mxu0 %v816
      %959 = vmatmul.mubr.f32.gmra.mrb[0].mxu0 %v815
      %v960 = vpop.f32.mrb[0].mxu0
      %v961 = vadd.f32 %v857, %v960
      %v962 = vpop.f32.mrb[0].mxu0
      %963 = vmatprep.mubr.f32.mxu0 %v818
      %964 = vmatmul.mubr.f32.gmra.mrb[0].mxu0 %v817
      %v965 = vpop.f32.mrb[0].mxu0
      %v966 = vadd.f32 %v862, %v965
      %v967 = vpop.f32.mrb[0].mxu0
      %968 = vmatprep.mubr.f32.mxu0 %v820
      %969 = vmatmul.mubr.f32.gmra.mrb[0].mxu0 %v819
      %v970 = vpop.f32.mrb[0].mxu0
      %v971 = vadd.f32 %v867, %v970
      %v972 = vpop.f32.mrb[0].mxu0
      %973 = vdwg.mxu0
      %v974 = vmax.f32 %v936, 0.0
      %v975 = vmax.f32 %v941, 0.0
      %v976 = vmax.f32 %v946, 0.0
      %v977 = vmax.f32 %v951, 0.0
      %v978 = vmax.f32 %v956, 0.0
      %v979 = vmax.f32 %v961, 0.0
      %v980 = vmax.f32 %v966, 0.0
      %v981 = vmax.f32 %v971, 0.0
      %v982 = vld [vmem:[%s5] sm:$0x7]
      %v983 = vld [vmem:[%s6] sm:$0x7]
      %985 = vset.pattern.permute.xlu0 0
      %986 = vperm.xlu0 %985, %v983
      %v987 = vpop.permute.xlu0 %986
      %vm989 = vcmask 523264
      %v991 = vsel %vm989, %v982, 0
      %993 = vmatprep.subr.mxu0 0.0
      %994 = vmatpush1.msra.mxu0 %v974
      %995 = vmatprep.subr.mxu0 0.0
      %996 = vmatpush1.msra.mxu0 %v975
      %997 = vmatprep.subr.mxu0 0.0
      %998 = vmatpush1.msra.mxu0 %v976
      %999 = vmatprep.subr.mxu0 0.0
      %1000 = vmatpush1.msra.mxu0 %v977
      %1001 = vmatprep.subr.mxu0 0.0
      %1002 = vmatpush1.msra.mxu0 %v978
      %1003 = vmatprep.subr.mxu0 0.0
      %1004 = vmatpush1.msra.mxu0 %v979
      %1005 = vmatprep.subr.mxu0 0.0
      %1006 = vmatpush1.msra.mxu0 %v980
      %1007 = vmatprep.subr.mxu0 0.0
      %1008 = vmatpush1.msra.mxu0 %v981
      %1009 = vmatprep.subr.mxu0 0.0
      %1010 = vmatpush1.msra.mxu0 0.0
      %1011 = vmatprep.subr.mxu0 0.0
      %1012 = vmatpush1.msra.mxu0 0.0
      %1013 = vmatprep.subr.mxu0 0.0
      %1014 = vmatpush1.msra.mxu0 0.0
      %1015 = vmatprep.subr.mxu0 0.0
      %1016 = vmatpush1.msra.mxu0 0.0
      %1017 = vmatprep.subr.mxu0 0.0
      %1018 = vmatpush1.msra.mxu0 0.0
      %1019 = vmatprep.subr.mxu0 0.0
      %1020 = vmatpush1.msra.mxu0 0.0
      %1021 = vmatprep.subr.mxu0 0.0
      %1022 = vmatpush1.msra.mxu0 0.0
      %1023 = vmatprep.subr.mxu0 0.0
      %1024 = vmatpush1.msra.mxu0 0.0
      %1025 = vmatprep.subr.mxu0 0.0
      %1026 = vmatpush1.msra.mxu0 0.0
      %1027 = vmatprep.subr.mxu0 0.0
      %1028 = vmatpush1.msra.mxu0 0.0
      %1029 = vmatprep.subr.mxu0 0.0
      %1030 = vmatpush1.msra.mxu0 0.0
      %1031 = vmatprep.subr.mxu0 0.0
      %1032 = vmatpush1.msra.mxu0 0.0
      %1033 = vmatprep.subr.mxu0 0.0
      %1034 = vmatpush1.msra.mxu0 0.0
      %1035 = vmatprep.subr.mxu0 0.0
      %1036 = vmatpush1.msra.mxu0 0.0
      %1037 = vmatprep.subr.mxu0 0.0
      %1038 = vmatpush1.msra.mxu0 0.0
      %1039 = vmatprep.subr.mxu0 0.0
      %1040 = vmatpush1.msra.mxu0 0.0
      %1041 = vmatprep.subr.mxu0 0.0
      %1042 = vmatpush1.msra.mxu0 0.0
      %1043 = vmatprep.subr.mxu0 0.0
      %1044 = vmatpush1.msra.mxu0 0.0
      %1045 = vmatprep.subr.mxu0 0.0
      %1046 = vmatpush1.msra.mxu0 0.0
      %1047 = vmatprep.subr.mxu0 0.0
      %1048 = vmatpush1.msra.mxu0 0.0
      %1049 = vmatprep.subr.mxu0 0.0
      %1050 = vmatpush1.msra.mxu0 0.0
      %1051 = vmatprep.subr.mxu0 0.0
      %1052 = vmatpush1.msra.mxu0 0.0
      %1053 = vmatprep.subr.mxu0 0.0
      %1054 = vmatpush1.msra.mxu0 0.0
      %1055 = vmatprep.subr.mxu0 0.0
      %1056 = vmatpush1.msra.mxu0 0.0
      %1057 = vmatprep.mubr.f32.mxu0 0.0
      %1058 = vmatmul.mubr.f32.gmra.mrb[0].mxu0 %v991
      %v1059 = vpop.f32.mrb[0].mxu0
      %v1060 = vadd.f32 %v987, %v1059
      %v1061 = vpop.f32.mrb[0].mxu0
      %1062 = vdwg.mxu0
      %vm1063 = vcmask 124928
      %1064 = vst.msk [vmem:[%s307] sm:$0x7] %vm1063, %v1060
      %p1065 = scmp.lt.s32.totalorder %s22, 1
      %s1066 = scalar_select %p1065, %s22, 1
      %p1067 = scmp.lt.s32.totalorder %s23, 0
      %s1068 = scalar_select %p1067, %s23, 0
      %s1069 = sadd.s32 %s1068, %s1066
      %s1070 = smul.addr %s1069, 4
      %s1071 = scalar_lea.vmem %s7, %s1070
      // Predicated region
      $region49: #{regressor_forward.1} parent=47 // pred_check
        %p1072 = pneg %p204
      $region50: #{regressor_forward.1} parent=47 // pred_check_branch
        %1074 = sbr.rel (%p1072) target = $region52
      $region51: #{regressor_forward.1} parent=47 // pred_region
        _
      $region52: #{regressor_forward.1} parent=47 // pred_fallthru
        _
    $region48: #{regressor_forward.1} parent=5 // pred_fallthru
      _
    %p1075 = scmp.le.s32.totalorder 2, %s13
    // Predicated region
    $region53: #{regressor_forward.1} parent=5 // pred_check
      %p1076 = pneg %p1075
    $region54: #{regressor_forward.1} parent=5 // pred_check_branch
      %1078 = sbr.rel (%p1076) target = $region56
    $region55: #{regressor_forward.1} parent=5 // pred_region
      %s1079 = ssub.s32 %s13, 2
      // Predicated region
      $region57: #{regressor_forward.1} parent=55 // pred_check
        %p1080 = pneg %p210
      $region58: #{regressor_forward.1} parent=55 // pred_check_branch
        %1082 = sbr.rel (%p1080) target = $region60
      $region59: #{regressor_forward.1} parent=55 // pred_region
        %p1083 = scmp.lt.s32.totalorder %s24, 1
        %s1084 = scalar_select %p1083, %s24, 1
        %p1085 = scmp.lt.s32.totalorder %s25, 0
        %s1086 = scalar_select %p1085, %s25, 0
        %s1087 = sadd.s32 %s1086, %s1084
        %s1088 = smul.addr %s1087, 4
        %s1089 = scalar_lea.vmem %s7, %s1088
      $region60: #{regressor_forward.1} parent=55 // pred_fallthru
        _
    $region56: #{regressor_forward.1} parent=5 // pred_fallthru
      _
  $region6: #{regressor_forward.1} parent=0 // loop_footer
    %s17 = sadd.s32 1, %s13
  $region7: #{regressor_forward.1} parent=0 // loop_footer_branch
    %12 = sbr.rel target = $region3
  $region8: #{regressor_forward.1} parent=0 // loop_exit
    _

</llo_original>
